<compile_context>
chip_gen: v5e
topology: v5e:2x2
jax: 0.10.0
libtpu: 0.0.40
codegen_flags: <defaults>
</compile_context>

<pallas_src>
import jax
import jax.numpy as jnp
from jax.experimental import pallas as pl
from jax.experimental.pallas import tpu as pltpu

_LANE = 128  # lane-dense padded output width (real logits are the first 2 cols)


# ---------------------------------------------------------------------------
# Kernels
# ---------------------------------------------------------------------------
def _cls_head_kernel(x_ref, w1_ref, b1_ref, w2_ref, b2_ref, o_ref):
    """out = tanh(x @ W1 + b1) @ W2 + b2 for one row tile (whole K resident)."""
    # TODO(synk): dropout (p=0.1) omitted — forward corresponds to eval mode
    # where nn.Dropout is the identity.
    x = x_ref[...].astype(jnp.bfloat16)                        # (tm, 2H) bf16
    h = jnp.dot(x, w1_ref[...], preferred_element_type=jnp.float32)
    h = jnp.tanh(h + b1_ref[...])                              # (tm, H) f32
    y = jnp.dot(h.astype(jnp.bfloat16), w2_ref[...],
                preferred_element_type=jnp.float32)            # (tm, 128) f32
    o_ref[...] = (y + b2_ref[...]).astype(o_ref.dtype)


def _cls_head_kernel_ktiled(x_ref, w1_ref, b1_ref, w2_ref, b2_ref, o_ref,
                            acc_ref):
    """Same computation with the 2H contraction tiled along grid axis 1."""
    k = pl.program_id(1)

    @pl.when(k == 0)
    def _():
        acc_ref[...] = jnp.zeros_like(acc_ref)

    x = x_ref[...].astype(jnp.bfloat16)
    acc_ref[...] += jnp.dot(x, w1_ref[...], preferred_element_type=jnp.float32)

    @pl.when(k == pl.num_programs(1) - 1)
    def _():
        h = jnp.tanh(acc_ref[...] + b1_ref[...])
        y = jnp.dot(h.astype(jnp.bfloat16), w2_ref[...],
                    preferred_element_type=jnp.float32)
        o_ref[...] = (y + b2_ref[...]).astype(o_ref.dtype)


# ---------------------------------------------------------------------------
# Tiling helpers
# ---------------------------------------------------------------------------
def _round_up(v, m):
    return ((v + m - 1) // m) * m


def _choose_row_tile(n_rows, row_tile, k_tiled):
    """>=4 grid steps (>=2 per v7x TC) when rows allow; ~256-row tile floor."""
    cap = min(row_tile, 256) if k_tiled else row_tile  # K path holds (tm,H) f32 acc
    n8 = _round_up(n_rows, 8)
    if n8 <= 256:
        return max(8, min(n8, cap))          # small batch: single (or few) tiles
    quarter = _round_up(pl.cdiv(n_rows, 4), 8)
    return max(8, min(cap, max(256, quarter), n8))


def _choose_k_tile(in_features, max_tk=1024):
    """Largest multiple of 128 dividing 2H that is <= max_tk (whole K if small)."""
    if in_features <= max_tk:
        return in_features
    for tk in range(max_tk, 127, -128):
        if in_features % tk == 0:
            return tk
    return in_features


# ---------------------------------------------------------------------------
# One-time weight preprocessing (hoisted out of the per-call path)
# ---------------------------------------------------------------------------
def prepare_unix_cls_head_params(w1, b1, w2, b2):
    """Cast/pad parameters once at init; reuse the result on every forward call.

    w1: (2H, H) dense weight stored (in, out);  b1: (H,)
    w2: (H, 2) out_proj weight stored (in, out); b2: (2,)
    """
    hidden = w1.shape[1]
    assert w1.shape == (2 * hidden, hidden), w1.shape
    assert b1.shape == (hidden,), b1.shape
    assert w2.shape == (hidden, 2), w2.shape
    assert b2.shape == (2,), b2.shape

    w1_b = w1.astype(jnp.bfloat16)
    b1_2d = b1.reshape(1, hidden).astype(jnp.float32)
    # Lane-dense output: pad out_proj to 128 columns with zeros.
    w2_p = jnp.zeros((hidden, _LANE), jnp.bfloat16).at[:, :2].set(
        w2.astype(jnp.bfloat16))
    b2_p = jnp.zeros((1, _LANE), jnp.float32).at[:, :2].set(
        b2.astype(jnp.float32))
    return {"w1": w1_b, "b1": b1_2d, "w2": w2_p, "b2": b2_p}


# ---------------------------------------------------------------------------
# Forward wrapper
# ---------------------------------------------------------------------------
def unix_roberta_classification_head(x, params, *, row_tile=512,
                                     out_dtype=jnp.bfloat16,
                                     return_padded=False):
    """
    x      : (..., hidden) activations; x.size must be divisible by 2*hidden.
             For best v6e bandwidth feed x as bf16 from the upstream producer
             (the kernel also accepts f32 and casts per tile).
    params : dict from prepare_unix_cls_head_params().
    returns: (N, 2) logits, N = x.size // (2*hidden); or the lane-dense
             (N, 128) padded buffer if return_padded=True (cols >= 2 are zero).
    """
    w1_b, b1_2d, w2_p, b2_p = params["w1"], params["b1"], params["w2"], params["b2"]
    in_features, hidden = w1_b.shape

    if x.size % in_features != 0:
        raise ValueError(
            f"x.size={x.size} is not divisible by 2*hidden={in_features}")
    x2 = x.reshape(-1, in_features)
    n_rows = x2.shape[0]

    # K-tile the first matmul only when a resident bf16 W1 would crowd VMEM
    # (hidden >= ~2048 -> W1 >= 16 MiB). RoBERTa-base/large keep whole K.
    w1_bytes = in_features * hidden * 2
    k_tiled = w1_bytes > 16 * 1024 * 1024
    tk = _choose_k_tile(in_features) if k_tiled else in_features
    k_tiled = k_tiled and (tk < in_features)

    tm = _choose_row_tile(n_rows, row_tile, k_tiled)
    row_grid = pl.cdiv(n_rows, tm)
    k_grid = in_features // tk

    x_itemsize = x2.dtype.itemsize
    out_itemsize = jnp.dtype(out_dtype).itemsize

    # Right-sized VMEM request: double-buffered x/out/weight tiles + biases +
    # the f32 intermediate/accumulator, with ~1.5x headroom, preferring to stay
    # under the 32 MiB scoped default (v7x has only 64 MiB physical per core).
    need = (2 * tm * tk * x_itemsize            # x tile
            + 2 * tk * hidden * 2               # W1 tile (bf16)
            + 2 * hidden * _LANE * 2            # W2 padded (bf16)
            + 2 * tm * _LANE * out_itemsize     # output tile
            + 2 * (hidden + _LANE) * 4          # biases (f32)
            + tm * hidden * 4)                  # f32 intermediate / accumulator
    vmem_limit = max(int(need * 1.5), 8 * 1024 * 1024)
    vmem_limit = min(vmem_limit, 32 * 1024 * 1024)
    vmem_limit = max(vmem_limit, int(need * 1.2))

    cost = pl.CostEstimate(
        flops=2 * n_rows * in_features * hidden + 2 * n_rows * hidden * _LANE,
        transcendentals=n_rows * hidden,
        bytes_accessed=(x2.size * x_itemsize
                        + w1_b.size * 2 + b1_2d.size * 4
                        + w2_p.size * 2 + b2_p.size * 4
                        + n_rows * _LANE * out_itemsize),
    )

    if not k_tiled:
        grid = (row_grid,)
        in_specs = [
            pl.BlockSpec((tm, in_features), lambda i: (i, 0)),      # x tile
            pl.BlockSpec((in_features, hidden), lambda i: (0, 0)),  # W1 (resident)
            pl.BlockSpec((1, hidden), lambda i: (0, 0)),            # b1
            pl.BlockSpec((hidden, _LANE), lambda i: (0, 0)),        # W2 (padded)
            pl.BlockSpec((1, _LANE), lambda i: (0, 0)),             # b2 (padded)
        ]
        out_specs = pl.BlockSpec((tm, _LANE), lambda i: (i, 0))
        scratch_shapes = ()
        kernel = _cls_head_kernel
        dim_sem = ("parallel",)
    else:
        grid = (row_grid, k_grid)
        in_specs = [
            pl.BlockSpec((tm, tk), lambda i, k: (i, k)),            # x tile
            pl.BlockSpec((tk, hidden), lambda i, k: (k, 0)),        # W1 K-tile
            pl.BlockSpec((1, hidden), lambda i, k: (0, 0)),         # b1
            pl.BlockSpec((hidden, _LANE), lambda i, k: (0, 0)),     # W2 (padded)
            pl.BlockSpec((1, _LANE), lambda i, k: (0, 0)),          # b2 (padded)
        ]
        out_specs = pl.BlockSpec((tm, _LANE), lambda i, k: (i, 0))
        scratch_shapes = (pltpu.VMEM((tm, hidden), jnp.float32),)
        kernel = _cls_head_kernel_ktiled
        dim_sem = ("parallel", "arbitrary")

    out = pl.pallas_call(
        kernel,
        out_shape=jax.ShapeDtypeStruct((n_rows, _LANE), out_dtype),
        grid_spec=pltpu.PrefetchScalarGridSpec(
            num_scalar_prefetch=0,
            grid=grid,
            in_specs=in_specs,
            out_specs=out_specs,
            scratch_shapes=scratch_shapes,
        ),
        compiler_params=pltpu.CompilerParams(
            dimension_semantics=dim_sem,
            vmem_limit_bytes=vmem_limit,
        ),
        cost_estimate=cost,
    )(x2, w1_b, b1_2d, w2_p, b2_p)

    if return_padded:
        return out
    return out[:, :2]


# ---------------------------------------------------------------------------
# Reference + self-test
# ---------------------------------------------------------------------------
def _reference(x, w1, b1, w2, b2):
    hidden = x.shape[-1]
    x2 = x.reshape(-1, 2 * hidden).astype(jnp.float32)
    h = jnp.tanh(x2 @ w1.astype(jnp.float32) + b1.astype(jnp.float32))
    return h @ w2.astype(jnp.float32) + b2.astype(jnp.float32)


if __name__ == "__main__":
    hidden = 32
    batch, seq = 2, 8   # N = batch*seq*hidden / (2*hidden) = 8 rows

    key = jax.random.PRNGKey(0)
    kx, kw1, kb1, kw2, kb2 = jax.random.split(key, 5)

    # Input activations, shape (batch, seq, hidden) -> reshaped to (-1, 2*hidden)
    x = jax.random.normal(kx, (batch, seq, hidden), dtype=jnp.float32)

    # Parameter shapes from the module's __init__ (stored (in, out)):
    #   dense:    Linear(2*hidden -> hidden), out_proj: Linear(hidden -> 2)
    w1 = jax.random.normal(kw1, (2 * hidden, hidden), dtype=jnp.float32) * 0.05
    b1 = jax.random.normal(kb1, (hidden,), dtype=jnp.float32) * 0.05
    w2 = jax.random.normal(kw2, (hidden, 2), dtype=jnp.float32) * 0.05
    b2 = jax.random.normal(kb2, (2,), dtype=jnp.float32) * 0.05

    # One-time (hoisted) weight preprocessing, then the fused kernel call.
    params = prepare_unix_cls_head_params(w1, b1, w2, b2)
    out = unix_roberta_classification_head(x, params)
    out = jax.block_until_ready(out)

    ref = _reference(x, w1, b1, w2, b2)
    assert out.shape == (batch * seq // 2, 2), out.shape
    # bf16 matmul inputs / bf16 output store with f32 accumulation -> loosen
    # tolerance vs the pure-f32 reference.
    assert jnp.allclose(out.astype(jnp.float32), ref, atol=3e-2, rtol=3e-2), \
        "mismatch vs reference"

    print("KERNEL_OK")
</pallas_src>

<mosaic_0001>
module attributes {stable_mosaic.version = 11 : i64} {
  func.func @_cls_head_kernel(%arg0: i32, %arg1: memref<8x64xf32, #tpu.memory_space<vmem>>, %arg2: memref<64x32xbf16, #tpu.memory_space<vmem>>, %arg3: memref<1x32xf32, #tpu.memory_space<vmem>>, %arg4: memref<32x128xbf16, #tpu.memory_space<vmem>>, %arg5: memref<1x128xf32, #tpu.memory_space<vmem>>, %arg6: memref<8x128xbf16, #tpu.memory_space<vmem>>) attributes {dimension_semantics = [#tpu.dimension_semantics<parallel>], iteration_bounds = array<i64: 1>, scalar_prefetch = 0 : i64, scratch_operands = 0 : i64, tpu.core_type = #tpu.core_type<tc>, window_params = [{transform_indices = @transform_0, window_bounds = array<i64: 8, 64>}, {pipeline_mode = #tpu.pipeline_mode<synchronous>, transform_indices = @transform_1, window_bounds = array<i64: 64, 32>}, {pipeline_mode = #tpu.pipeline_mode<synchronous>, transform_indices = @transform_2, window_bounds = array<i64: 1, 32>}, {pipeline_mode = #tpu.pipeline_mode<synchronous>, transform_indices = @transform_3, window_bounds = array<i64: 32, 128>}, {pipeline_mode = #tpu.pipeline_mode<synchronous>, transform_indices = @transform_4, window_bounds = array<i64: 1, 128>}, {transform_indices = @transform_5, window_bounds = array<i64: 8, 128>}]} {
    %c0 = arith.constant 0 : index
    %c0_0 = arith.constant 0 : index
    %0 = vector.load %arg1[%c0, %c0_0] : memref<8x64xf32, #tpu.memory_space<vmem>>, vector<8x64xf32>
    %1 = arith.truncf %0 : vector<8x64xf32> to vector<8x64xbf16>
    %c0_1 = arith.constant 0 : index
    %c0_2 = arith.constant 0 : index
    %2 = vector.load %arg2[%c0_1, %c0_2] : memref<64x32xbf16, #tpu.memory_space<vmem>>, vector<64x32xbf16>
    %cst = arith.constant dense<0.000000e+00> : vector<8x32xf32>
    %3 = tpu.matmul %1, %2, %cst {dimension_numbers = #tpu.dot_dimension_numbers<[1], [0], [0], [1], [0, 0, 1, 1], [], []>} : vector<8x64xbf16>, vector<64x32xbf16>, vector<8x32xf32> -> vector<8x32xf32>
    %c0_3 = arith.constant 0 : index
    %c0_4 = arith.constant 0 : index
    %4 = vector.load %arg3[%c0_3, %c0_4] : memref<1x32xf32, #tpu.memory_space<vmem>>, vector<1x32xf32>
    %5 = vector.broadcast %4 : vector<1x32xf32> to vector<8x32xf32>
    %6 = arith.addf %3, %5 : vector<8x32xf32>
    %7 = math.tanh %6 : vector<8x32xf32>
    %8 = arith.truncf %7 : vector<8x32xf32> to vector<8x32xbf16>
    %c0_5 = arith.constant 0 : index
    %c0_6 = arith.constant 0 : index
    %9 = vector.load %arg4[%c0_5, %c0_6] : memref<32x128xbf16, #tpu.memory_space<vmem>>, vector<32x128xbf16>
    %cst_7 = arith.constant dense<0.000000e+00> : vector<8x128xf32>
    %10 = tpu.matmul %8, %9, %cst_7 {dimension_numbers = #tpu.dot_dimension_numbers<[1], [0], [0], [1], [0, 0, 1, 1], [], []>} : vector<8x32xbf16>, vector<32x128xbf16>, vector<8x128xf32> -> vector<8x128xf32>
    %c0_8 = arith.constant 0 : index
    %c0_9 = arith.constant 0 : index
    %11 = vector.load %arg5[%c0_8, %c0_9] : memref<1x128xf32, #tpu.memory_space<vmem>>, vector<1x128xf32>
    %12 = vector.broadcast %11 : vector<1x128xf32> to vector<8x128xf32>
    %13 = arith.addf %10, %12 : vector<8x128xf32>
    %14 = arith.truncf %13 : vector<8x128xf32> to vector<8x128xbf16>
    %c0_10 = arith.constant 0 : index
    %c0_11 = arith.constant 0 : index
    %15 = vector.load %arg6[%c0_10, %c0_11] : memref<8x128xbf16, #tpu.memory_space<vmem>>, vector<8x128xbf16>
    tpu.vector_store %arg6[%c0_10, %c0_11], %14 {strides = array<i32>} : memref<8x128xbf16, #tpu.memory_space<vmem>>, vector<8x128xbf16>,
    return
  }
  func.func @transform_0(%arg0: i32) -> (i32, i32) {
    %c0_i32 = arith.constant 0 : i32
    %c0_i32_0 = arith.constant 0 : i32
    return %arg0, %c0_i32 : i32, i32
  }
  func.func @transform_1(%arg0: i32) -> (i32, i32) {
    %c0_i32 = arith.constant 0 : i32
    %c0_i32_0 = arith.constant 0 : i32
    %c0_i32_1 = arith.constant 0 : i32
    return %c0_i32, %c0_i32_0 : i32, i32
  }
  func.func @transform_2(%arg0: i32) -> (i32, i32) {
    %c0_i32 = arith.constant 0 : i32
    %c0_i32_0 = arith.constant 0 : i32
    %c0_i32_1 = arith.constant 0 : i32
    return %c0_i32, %c0_i32_0 : i32, i32
  }
  func.func @transform_3(%arg0: i32) -> (i32, i32) {
    %c0_i32 = arith.constant 0 : i32
    %c0_i32_0 = arith.constant 0 : i32
    %c0_i32_1 = arith.constant 0 : i32
    return %c0_i32, %c0_i32_0 : i32, i32
  }
  func.func @transform_4(%arg0: i32) -> (i32, i32) {
    %c0_i32 = arith.constant 0 : i32
    %c0_i32_0 = arith.constant 0 : i32
    %c0_i32_1 = arith.constant 0 : i32
    return %c0_i32, %c0_i32_0 : i32, i32
  }
  func.func @transform_5(%arg0: i32) -> (i32, i32) {
    %c0_i32 = arith.constant 0 : i32
    %c0_i32_0 = arith.constant 0 : i32
    return %arg0, %c0_i32 : i32, i32
  }
}

</mosaic_0001>

<llo_original>
// kernel: tpu_custom_call.1
$region0: #{tpu_custom_call.1}
  #allocation0 [shape = 'u32[]', space=smem, size = 0x4, offset = 0x4, fixed_abs, tag = 'smem constant byte address 0x4 - core index']
  #allocation1 [shape = 'u32[72,128]{1,0:T(1,128)}', space=vmem, size = 0x9000, scoped, tag = 'internal scratch']
  %s0 = inlined_call_operand.vmem [shape: f32[8,64], index: 0, kind: input, shape index: {}]
  %s1 = inlined_call_operand.vmem [shape: bf16[64,32], index: 1, kind: input, shape index: {}]
  %s2 = inlined_call_operand.vmem [shape: f32[1,32], index: 2, kind: input, shape index: {}]
  %s3 = inlined_call_operand.vmem [shape: bf16[32,128], index: 3, kind: input, shape index: {}]
  %s4 = inlined_call_operand.vmem [shape: f32[1,128], index: 4, kind: input, shape index: {}]
  %s5 = inlined_call_operand.hbm [shape: bf16[8,128], index: 5, kind: output, shape index: {}]
  %s6 = sld [smem:[#allocation0]]
  $region30: #{tpu_custom_call.1} parent=0
    _
  %s8 = ssub.s32 1, %s6
  %s9 = scalar_select 0, %s8, %s6
  $region1: #{tpu_custom_call.1} parent=0
    #allocation2 [shape = 'u8[2048]{0}', space=vmem, size = 0x800, scoped, tag = 'output window, operand 0, single buffered']
    #allocation3 [shape = 's32[1]{0}', space=sflag, size = 0x4, scoped, tag = 'scoped memory for tpu_custom_call.1']
    %10 = vsyncpa [#allocation3], 0
    // Predicated region
    $region2: #{tpu_custom_call.1} parent=1 // pred_check
      _
    $region3: #{tpu_custom_call.1} parent=1 // pred_check_branch
      %12 = sbr.rel (0) target = $region5
    $region4: #{tpu_custom_call.1} parent=1 // pred_region
      _
    $region5: #{tpu_custom_call.1} parent=1 // pred_fallthru
      _
    // Predicated region
    $region6: #{tpu_custom_call.1} parent=1 // pred_check
      _
    $region7: #{tpu_custom_call.1} parent=1 // pred_check_branch
      %14 = sbr.rel (0) target = $region9
    $region8: #{tpu_custom_call.1} parent=1 // pred_region
      _
    $region9: #{tpu_custom_call.1} parent=1 // pred_fallthru
      _
    // Predicated region
    $region10: #{tpu_custom_call.1} parent=1 // pred_check
      _
    $region11: #{tpu_custom_call.1} parent=1 // pred_check_branch
      %16 = sbr.rel (0) target = $region13
    $region12: #{tpu_custom_call.1} parent=1 // pred_region
      _
    $region13: #{tpu_custom_call.1} parent=1 // pred_fallthru
      _
    // Predicated region
    $region14: #{tpu_custom_call.1} parent=1 // pred_check
      _
    $region15: #{tpu_custom_call.1} parent=1 // pred_check_branch
      %18 = sbr.rel (0) target = $region17
    $region16: #{tpu_custom_call.1} parent=1 // pred_region
      _
    $region17: #{tpu_custom_call.1} parent=1 // pred_fallthru
      _
    // Predicated region
    $region18: #{tpu_custom_call.1} parent=1 // pred_check
      _
    $region19: #{tpu_custom_call.1} parent=1 // pred_check_branch
      %20 = sbr.rel (0) target = $region21
    $region20: #{tpu_custom_call.1} parent=1 // pred_region
      _
    $region21: #{tpu_custom_call.1} parent=1 // pred_fallthru
      _
    %v22 = vld [vmem:[%s0] sm:$0xff]
    %v23 = vpack.c.bf16 %v22, %v22
    %v24 = vld [vmem:[%s1] sm:$0xf]
    %v25 = vld [vmem:[%s1 + $0x4] sm:$0xf]
    %v26 = vld [vmem:[%s1 + $0x8] sm:$0xf]
    %v27 = vld [vmem:[%s1 + $0xc] sm:$0xf]
    %v28 = vld [vmem:[%s1 + $0x10] sm:$0xf]
    %v29 = vld [vmem:[%s1 + $0x14] sm:$0xf]
    %v30 = vld [vmem:[%s1 + $0x18] sm:$0xf]
    %v31 = vld [vmem:[%s1 + $0x1c] sm:$0xf]
    %v32 = vld [vmem:[%s2] sm:$0x1]
    %v34 = vperm.slane %v32, 0
    %v44 = vunpack.c.l.b16 %v24
    %v45 = vunpack.c.l.b16 %v25
    %v46 = vunpack.c.l.b16 %v26
    %v47 = vunpack.c.l.b16 %v27
    %v48 = vunpack.c.l.b16 %v28
    %v49 = vunpack.c.l.b16 %v29
    %v50 = vunpack.c.l.b16 %v30
    %v51 = vunpack.c.l.b16 %v31
    %v52 = vpack.c.b16 %v45, %v44
    %v53 = vpack.c.b16 %v47, %v46
    %v54 = vpack.c.b16 %v49, %v48
    %v55 = vpack.c.b16 %v51, %v50
    %vm60 = vcmask 523264
    %v62 = vsel %vm60, %v23, 0
    %64 = vmatpush.bf16.msra.mxu0 0
    %65 = vmatpush.bf16.msra.mxu0 0
    %66 = vmatpush.bf16.msra.mxu0 0
    %67 = vmatpush.bf16.msra.mxu0 0
    %68 = vmatpush.bf16.msra.mxu0 %v55
    %69 = vmatpush.bf16.msra.mxu0 %v54
    %70 = vmatpush.bf16.msra.mxu0 %v53
    %71 = vmatpush.bf16.msra.mxu0 %v52
    %72 = vmatmul.bf16.gmra.mxu0 %v62
    %v73 = vpop.f32.mrf.mxu0
    %v74 = vadd.f32 %v34, %v73
    %v75 = vpop.f32.mrf.mxu0
    %76 = vdwg.mxu0
    %v77 = vtanh.pop %v74
    %v78 = vpack.c.bf16 %v77, %v77
    %v79 = vld [vmem:[%s3] sm:$0xf]
    %v80 = vld [vmem:[%s3 + $0x4] sm:$0xf]
    %v81 = vld [vmem:[%s3 + $0x8] sm:$0xf]
    %v82 = vld [vmem:[%s3 + $0xc] sm:$0xf]
    %v83 = vld [vmem:[%s4] sm:$0x1]
    %v85 = vperm.slane %v83, 0
    %v91 = vunpack.c.l.b16 %v79
    %v92 = vunpack.c.l.b16 %v80
    %v93 = vunpack.c.l.b16 %v81
    %v94 = vunpack.c.l.b16 %v82
    %v95 = vpack.c.b16 %v92, %v91
    %v96 = vpack.c.b16 %v94, %v93
    %vm99 = vcmask 261120
    %v101 = vsel %vm99, %v78, 0
    %103 = vmatpush.bf16.msra.mxu0 0
    %104 = vmatpush.bf16.msra.mxu0 0
    %105 = vmatpush.bf16.msra.mxu0 0
    %106 = vmatpush.bf16.msra.mxu0 0
    %107 = vmatpush.bf16.msra.mxu0 0
    %108 = vmatpush.bf16.msra.mxu0 0
    %109 = vmatpush.bf16.msra.mxu0 %v96
    %110 = vmatpush.bf16.msra.mxu0 %v95
    %111 = vmatmul.bf16.gmra.mxu0 %v101
    %v112 = vpop.f32.mrf.mxu0
    %v113 = vadd.f32 %v85, %v112
    %v114 = vpop.f32.mrf.mxu0
    %115 = vdwg.mxu0
    %v116 = vpack.c.bf16 %v113, %v113
    %117 = vst [vmem:[#allocation2] sm:$0xf] %v116
    // Predicated region
    $region22: #{tpu_custom_call.1} parent=1 // pred_check
      _
    $region23: #{tpu_custom_call.1} parent=1 // pred_check_branch
      %119 = sbr.rel (0) target = $region25
    $region24: #{tpu_custom_call.1} parent=1 // pred_region
      %121 = vsyncadd [#allocation3], 0
      %s123 = sshll.u32 [#allocation2], 4
      %s124 = int_to_ptr.vmem [resolvable:$true] %s123
      %s125 = sshll.u32 %s5, 4
      %s126 = int_to_ptr.hbm [resolvable:$true] %s125
      %128 = dma.vmem_to_hbm [thread:$0]  %s124, 64, %s126, [#allocation3]
    $region25: #{tpu_custom_call.1} parent=1 // pred_fallthru
      _
    // Predicated region
    $region26: #{tpu_custom_call.1} parent=1 // pred_check
      _
    $region27: #{tpu_custom_call.1} parent=1 // pred_check_branch
      %130 = sbr.rel (0) target = $region29
    $region28: #{tpu_custom_call.1} parent=1 // pred_region
      %132 = dma.done [#allocation3], 64
    $region29: #{tpu_custom_call.1} parent=1 // pred_fallthru
      _
    %133 = vsyncpa [#allocation3], 1

</llo_original>
